<compile_context>
chip_gen: v6e
topology: v6e:2x2x1
jax: 0.10.0
libtpu: 0.0.40
codegen_flags: <defaults>
</compile_context>

<pallas_src>
import functools
import math

import jax
import jax.numpy as jnp
from jax.experimental import pallas as pl
from jax.experimental.pallas import tpu as pltpu


_LOG_EPS = math.log(1e-8)  # torch clamps p at min=1e-8 (upper clamp p<=1 is automatic)


def _focal_kernel(x_ref, t_ref, loss_ref, cnt_ref, *,
                  alpha, gamma, ignore_label, num_classes, hw, tiles_per_split):
    j = pl.program_id(2)  # pixel-tile index within this parallel split (reduction axis)

    @pl.when(j == 0)
    def _():
        loss_ref[...] = jnp.zeros_like(loss_ref)
        cnt_ref[...] = jnp.zeros_like(cnt_ref)

    x = x_ref[0].astype(jnp.float32)   # (c, T) logits, classes on sublanes
    t = t_ref[0].astype(jnp.int32)     # (1, T) targets
    tile_hw = t.shape[-1]

    # Valid pixels.  Label range check (the original torch module would crash on
    # labels in [num_classes, ignore_label) via one_hot.index_select OOB; here
    # such labels are explicitly masked) AND in-bounds lanes: the last pixel
    # tile of an image may be partial, and the duplicated tail tile produced by
    # the v7x parallel hw-split maps past hw entirely -> masked to zero.
    tile_idx = pl.program_id(1) * tiles_per_split + j
    lane = jax.lax.broadcasted_iota(jnp.int32, (1, tile_hw), 1)
    in_bounds = (tile_idx * tile_hw + lane) < hw
    valid = jnp.logical_and(t >= 0, t != ignore_label)
    valid = jnp.logical_and(valid, t < num_classes)
    valid = jnp.logical_and(valid, in_bounds)

    # Softmax statistics over the class (sublane) axis.
    m = jnp.max(x, axis=0, keepdims=True)                # (1, T)
    e = jnp.exp(x - m)                                    # (c, T)  -- c EUP exps/pixel
    s = jnp.sum(e, axis=0, keepdims=True)                 # (1, T)

    # One-hot select: a single compare feeds both the target logit (for the
    # log-domain log p) and the target softmax numerator (for p), so no second
    # exp is needed.
    onehot = jax.lax.broadcasted_iota(jnp.int32, x.shape, 0) == t
    x_t = jnp.sum(jnp.where(onehot, x, 0.0), axis=0, keepdims=True)
    e_t = jnp.sum(jnp.where(onehot, e, 0.0), axis=0, keepdims=True)

    # p = softmax(x)[target] from the numerators; log p in the log domain.
    # Clamping both at 1e-8 / log(1e-8) reproduces torch.clamp(p, 1e-8, 1.0).
    # (If this ever becomes EUP-bound, the divide can become
    #  pl.reciprocal(s, approx=True) at a small accuracy cost.)
    p = jnp.maximum(e_t / s, 1e-8)
    logp = jnp.maximum((x_t - m) - jnp.log(s), _LOG_EPS)

    one_minus_p = 1.0 - p
    if gamma == 2.0:
        focal = one_minus_p * one_minus_p        # VPU muls, no jnp.power
    elif gamma == 1.0:
        focal = one_minus_p
    elif gamma == 0.0:
        focal = jnp.ones_like(one_minus_p)
    else:
        focal = jnp.power(one_minus_p, gamma)

    loss = jnp.where(valid, (-alpha) * focal * logp, 0.0)   # (1, T), lane dense

    # Accumulate lane-dense partial sums straight into the resident output block.
    loss_ref[0] += loss
    cnt_ref[0] += valid.astype(jnp.float32)


def _choose_tile_hw(hw, max_tile_hw):
    """Largest legal pixel tile.  Whole image in one tile when it fits (a block
    dim equal to the full array dim is always legal, no 128-divisibility
    needed); otherwise the largest multiple of 128 that fits the budget, with
    the ragged tail handled by in-kernel masking (no padding pass)."""
    assert max_tile_hw >= 128
    if hw <= max_tile_hw:
        return hw
    return (max_tile_hw // 128) * 128


@functools.partial(
    jax.jit,
    static_argnames=("num_classes", "ignore_label", "alpha", "gamma",
                     "size_average", "max_tile_hw"))
def focal_loss_2d(cls_preds, cls_targets, *, num_classes=19, ignore_label=250,
                  alpha=0.25, gamma=2.0, size_average=True, max_tile_hw=16384):
    """cls_preds: (n, c, h, w) float (f32 or bf16), cls_targets: (n, h, w) int."""
    n, c, h, w = cls_preds.shape
    assert c == num_classes
    assert cls_targets.shape == (n, h, w)

    hw = h * w
    tile_hw = _choose_tile_hw(hw, max_tile_hw)
    n_hw = -(-hw // tile_hw)                    # ceil: last tile may be partial

    # Feed both TensorCores on v7x when the batch axis alone cannot (n == 1);
    # harmless no-op on single-TC v5e/v6e.
    n_split = 2 if (n < 2 and n_hw >= 2) else 1
    tps = -(-n_hw // n_split)                   # hw tiles per parallel split

    # Free reshapes only: no jnp.pad, no dtype upcast of the logits (bf16 stays
    # bf16 on the wire; the kernel upcasts in VMEM).
    x = cls_preds.reshape(n, c, hw)
    t = cls_targets.reshape(n, 1, hw)
    if t.dtype != jnp.int32:    # int32 targets at the API boundary avoid this pass
        t = t.astype(jnp.int32)

    kernel = functools.partial(
        _focal_kernel, alpha=float(alpha), gamma=float(gamma),
        ignore_label=int(ignore_label), num_classes=int(num_classes),
        hw=int(hw), tiles_per_split=int(tps))

    def in_map(b, s, j):
        # Clamp the (possibly duplicated) tail tile of the second split back in
        # range; its contribution is masked to zero in-kernel.
        return (b, 0, jnp.minimum(s * tps + j, n_hw - 1))

    def out_map(b, s, j):
        return (b * n_split + s, 0, 0)          # resident across j (accumulator)

    # Scale the scoped-VMEM request with the tile so big tiles compile on
    # v5e/v6e without starving v7x's 64 MiB physical VMEM.
    vmem_limit = (32 if tile_hw <= 16384 else 48) * 1024 * 1024

    loss_part, cnt_part = pl.pallas_call(
        kernel,
        out_shape=(jax.ShapeDtypeStruct((n * n_split, 1, tile_hw), jnp.float32),
                   jax.ShapeDtypeStruct((n * n_split, 1, tile_hw), jnp.float32)),
        grid_spec=pltpu.PrefetchScalarGridSpec(
            num_scalar_prefetch=0,
            grid=(n, n_split, tps),
            in_specs=[
                pl.BlockSpec((1, c, tile_hw), in_map),
                pl.BlockSpec((1, 1, tile_hw), in_map),
            ],
            out_specs=[
                pl.BlockSpec((1, 1, tile_hw), out_map),
                pl.BlockSpec((1, 1, tile_hw), out_map),
            ],
        ),
        compiler_params=pltpu.CompilerParams(
            dimension_semantics=("parallel", "parallel", "arbitrary"),
            vmem_limit_bytes=vmem_limit,
        ),
    )(x, t)

    # Tiny final reduction of the lane-dense per-(batch, split) partials.
    total_loss = jnp.sum(loss_part)
    if size_average:
        # NOTE: like the original module, this yields NaN if every pixel is ignored.
        return total_loss / jnp.sum(cnt_part)
    return total_loss


def focal_loss_2d_ref(cls_preds, cls_targets, *, num_classes=19, ignore_label=250,
                      alpha=0.25, gamma=2.0, size_average=True):
    """Plain-JAX reference mirroring the PyTorch forward (labels >= num_classes masked)."""
    n, c, h, w = cls_preds.shape
    t = cls_targets.reshape(-1).astype(jnp.int32)
    mask = (t >= 0) & (t != ignore_label) & (t < num_classes)
    prob = jax.nn.softmax(cls_preds.astype(jnp.float32), axis=1)
    prob = jnp.transpose(prob, (0, 2, 3, 1)).reshape(-1, c)
    idx = jnp.clip(t, 0, c - 1)[:, None]
    p = jnp.take_along_axis(prob, idx, axis=1)[:, 0]
    p = jnp.clip(p, 1e-8, 1.0)
    loss = -alpha * (1.0 - p) ** gamma * jnp.log(p)
    loss = jnp.where(mask, loss, 0.0)
    if size_average:
        return jnp.sum(loss) / jnp.sum(mask).astype(jnp.float32)
    return jnp.sum(loss)


if __name__ == "__main__":
    num_classes = 19
    ignore_label = 250

    def run_case(key, n, h, w, *, size_average, max_tile_hw, with_negatives=False,
                 dtype=jnp.float32, rtol=2e-5, atol=1e-5):
        k1, k2, k3, k4 = jax.random.split(key, 4)
        preds = jax.random.normal(k1, (n, num_classes, h, w), dtype=jnp.float32)
        preds = preds.astype(dtype)
        targets = jax.random.randint(k2, (n, h, w), 0, num_classes, dtype=jnp.int32)
        ignore_mask = jax.random.bernoulli(k3, 0.1, (n, h, w))
        targets = jnp.where(ignore_mask, ignore_label, targets)
        if with_negatives:
            neg_mask = jax.random.bernoulli(k4, 0.05, (n, h, w))
            targets = jnp.where(neg_mask, -1, targets)

        got = focal_loss_2d(preds, targets, num_classes=num_classes,
                            ignore_label=ignore_label, alpha=0.25, gamma=2.0,
                            size_average=size_average, max_tile_hw=max_tile_hw)
        got = jax.block_until_ready(got)
        want = focal_loss_2d_ref(preds, targets, num_classes=num_classes,
                                 ignore_label=ignore_label, alpha=0.25, gamma=2.0,
                                 size_average=size_average)
        assert jnp.allclose(got, want, rtol=rtol, atol=atol), (got, want)

    key = jax.random.PRNGKey(0)
    k1, k2, k3, k4, k5 = jax.random.split(key, 5)

    # 1) Canonical small case (single whole-image tile per batch item), mean reduction.
    run_case(k1, 2, 16, 16, size_average=True, max_tile_hw=16384)
    # 2) Multiple pixel tiles per batch item (resident-output accumulation over
    #    the "arbitrary" axis), sum reduction.
    run_case(k2, 2, 16, 16, size_average=False, max_tile_hw=128)
    # 3) Ragged h*w (partial last tile masked in-kernel, NO padding pass) plus
    #    some negative labels.
    run_case(k3, 2, 15, 17, size_average=True, max_tile_hw=128, with_negatives=True)
    # 4) n == 1 with an odd number of tiles: exercises the v7x dual-core hw
    #    split and the clamped duplicate-tail-tile path.
    run_case(k4, 1, 16, 24, size_average=True, max_tile_hw=128)
    # 5) bf16 logits stay bf16 on the wire (in-kernel upcast).
    run_case(k5, 2, 16, 16, size_average=True, max_tile_hw=16384,
             dtype=jnp.bfloat16, rtol=1e-4, atol=1e-4)

    print("KERNEL_OK")
</pallas_src>

<mosaic_0001>
module attributes {stable_mosaic.version = 11 : i64} {
  func.func @_focal_kernel(%arg0: i32, %arg1: i32, %arg2: i32, %arg3: memref<1x19x256xf32, #tpu.memory_space<vmem>>, %arg4: memref<1x1x256xi32, #tpu.memory_space<vmem>>, %arg5: memref<1x1x256xf32, #tpu.memory_space<vmem>>, %arg6: memref<1x1x256xf32, #tpu.memory_space<vmem>>) attributes {dimension_semantics = [#tpu.dimension_semantics<parallel>, #tpu.dimension_semantics<parallel>, #tpu.dimension_semantics<arbitrary>], iteration_bounds = array<i64: 2, 1, 1>, scalar_prefetch = 0 : i64, scratch_operands = 0 : i64, tpu.core_type = #tpu.core_type<tc>, window_params = [{transform_indices = @transform_0, window_bounds = array<i64: 1, 19, 256>}, {transform_indices = @transform_1, window_bounds = array<i64: 1, 1, 256>}, {transform_indices = @transform_2, window_bounds = array<i64: 1, 1, 256>}, {transform_indices = @transform_3, window_bounds = array<i64: 1, 1, 256>}]} {
    %c0_i32 = arith.constant 0 : i32
    %0 = arith.cmpi eq, %arg2, %c0_i32 : i32
    %1 = arith.extui %0 : i1 to i32
    %c0_i32_0 = arith.constant 0 : i32
    %2 = arith.cmpi ne, %1, %c0_i32_0 : i32
    scf.if %2 {
      %cst_30 = arith.constant 0.000000e+00 : f32
      %72 = vector.broadcast %cst_30 : f32 to vector<1x1x256xf32>
      %c0_31 = arith.constant 0 : index
      %c0_32 = arith.constant 0 : index
      %c0_33 = arith.constant 0 : index
      %73 = vector.load %arg5[%c0_31, %c0_32, %c0_33] : memref<1x1x256xf32, #tpu.memory_space<vmem>>, vector<1x1x256xf32>
      tpu.vector_store %arg5[%c0_31, %c0_32, %c0_33], %72 {strides = array<i32>} : memref<1x1x256xf32, #tpu.memory_space<vmem>>, vector<1x1x256xf32>,
      %cst_34 = arith.constant 0.000000e+00 : f32
      %74 = vector.broadcast %cst_34 : f32 to vector<1x1x256xf32>
      %c0_35 = arith.constant 0 : index
      %c0_36 = arith.constant 0 : index
      %c0_37 = arith.constant 0 : index
      %75 = vector.load %arg6[%c0_35, %c0_36, %c0_37] : memref<1x1x256xf32, #tpu.memory_space<vmem>>, vector<1x1x256xf32>
      tpu.vector_store %arg6[%c0_35, %c0_36, %c0_37], %74 {strides = array<i32>} : memref<1x1x256xf32, #tpu.memory_space<vmem>>, vector<1x1x256xf32>,
    } else {
    }
    %c0 = arith.constant 0 : index
    %c0_1 = arith.constant 0 : index
    %c0_2 = arith.constant 0 : index
    %3 = vector.load %arg3[%c0, %c0_1, %c0_2] : memref<1x19x256xf32, #tpu.memory_space<vmem>>, vector<1x19x256xf32>
    %4 = vector.shape_cast %3 : vector<1x19x256xf32> to vector<19x256xf32>
    %c0_3 = arith.constant 0 : index
    %c0_4 = arith.constant 0 : index
    %c0_5 = arith.constant 0 : index
    %5 = vector.load %arg4[%c0_3, %c0_4, %c0_5] : memref<1x1x256xi32, #tpu.memory_space<vmem>>, vector<1x1x256xi32>
    %6 = vector.shape_cast %5 : vector<1x1x256xi32> to vector<1x256xi32>
    %c1_i32 = arith.constant 1 : i32
    %7 = arith.muli %arg1, %c1_i32 : i32
    %8 = arith.addi %7, %arg2 : i32
    %9 = tpu.iota {dimensions = array<i32: 1>} : vector<1x256xi32>
    %c256_i32 = arith.constant 256 : i32
    %10 = arith.muli %8, %c256_i32 : i32
    %11 = vector.broadcast %10 : i32 to vector<1x256xi32>
    %12 = arith.addi %11, %9 : vector<1x256xi32>
    %c256_i32_6 = arith.constant 256 : i32
    %13 = vector.broadcast %c256_i32_6 : i32 to vector<1x256xi32>
    %14 = arith.cmpi slt, %12, %13 : vector<1x256xi32>
    %c0_i32_7 = arith.constant 0 : i32
    %15 = vector.broadcast %c0_i32_7 : i32 to vector<1x256xi32>
    %16 = arith.cmpi sge, %6, %15 : vector<1x256xi32>
    %c250_i32 = arith.constant 250 : i32
    %17 = vector.broadcast %c250_i32 : i32 to vector<1x256xi32>
    %18 = arith.cmpi ne, %6, %17 : vector<1x256xi32>
    %19 = arith.andi %16, %18 : vector<1x256xi1>
    %c19_i32 = arith.constant 19 : i32
    %20 = vector.broadcast %c19_i32 : i32 to vector<1x256xi32>
    %21 = arith.cmpi slt, %6, %20 : vector<1x256xi32>
    %22 = arith.andi %19, %21 : vector<1x256xi1>
    %23 = arith.andi %22, %14 : vector<1x256xi1>
    %cst = arith.constant dense<0xFF800000> : vector<256xf32>
    %24 = vector.multi_reduction <maximumf>, %4, %cst [0] : vector<19x256xf32> to vector<256xf32>
    %25 = vector.shape_cast %24 : vector<256xf32> to vector<1x256xf32>
    %26 = vector.broadcast %25 : vector<1x256xf32> to vector<19x256xf32>
    %27 = arith.subf %4, %26 : vector<19x256xf32>
    %28 = math.exp %27 : vector<19x256xf32>
    %cst_8 = arith.constant dense<0.000000e+00> : vector<256xf32>
    %29 = vector.multi_reduction <add>, %28, %cst_8 [0] : vector<19x256xf32> to vector<256xf32>
    %30 = vector.shape_cast %29 : vector<256xf32> to vector<1x256xf32>
    %31 = tpu.iota {dimensions = array<i32: 0>} : vector<19x256xi32>
    %32 = vector.broadcast %6 : vector<1x256xi32> to vector<19x256xi32>
    %33 = arith.cmpi eq, %31, %32 : vector<19x256xi32>
    %cst_9 = arith.constant 0.000000e+00 : f32
    %34 = vector.broadcast %cst_9 : f32 to vector<19x256xf32>
    %35 = arith.select %33, %4, %34 : vector<19x256xi1>, vector<19x256xf32>
    %cst_10 = arith.constant dense<0.000000e+00> : vector<256xf32>
    %36 = vector.multi_reduction <add>, %35, %cst_10 [0] : vector<19x256xf32> to vector<256xf32>
    %37 = vector.shape_cast %36 : vector<256xf32> to vector<1x256xf32>
    %cst_11 = arith.constant 0.000000e+00 : f32
    %38 = vector.broadcast %cst_11 : f32 to vector<19x256xf32>
    %39 = arith.select %33, %28, %38 : vector<19x256xi1>, vector<19x256xf32>
    %cst_12 = arith.constant dense<0.000000e+00> : vector<256xf32>
    %40 = vector.multi_reduction <add>, %39, %cst_12 [0] : vector<19x256xf32> to vector<256xf32>
    %41 = vector.shape_cast %40 : vector<256xf32> to vector<1x256xf32>
    %42 = arith.divf %41, %30 : vector<1x256xf32>
    %cst_13 = arith.constant 9.99999993E-9 : f32
    %43 = vector.broadcast %cst_13 : f32 to vector<1x256xf32>
    %44 = arith.maximumf %42, %43 : vector<1x256xf32>
    %45 = arith.subf %37, %25 : vector<1x256xf32>
    %46 = math.log %30 : vector<1x256xf32>
    %47 = arith.subf %45, %46 : vector<1x256xf32>
    %cst_14 = arith.constant -18.420681 : f32
    %48 = vector.broadcast %cst_14 : f32 to vector<1x256xf32>
    %49 = arith.maximumf %47, %48 : vector<1x256xf32>
    %cst_15 = arith.constant 1.000000e+00 : f32
    %50 = vector.broadcast %cst_15 : f32 to vector<1x256xf32>
    %51 = arith.subf %50, %44 : vector<1x256xf32>
    %52 = arith.mulf %51, %51 : vector<1x256xf32>
    %cst_16 = arith.constant -2.500000e-01 : f32
    %53 = vector.broadcast %cst_16 : f32 to vector<1x256xf32>
    %54 = arith.mulf %53, %52 : vector<1x256xf32>
    %55 = arith.mulf %54, %49 : vector<1x256xf32>
    %cst_17 = arith.constant 0.000000e+00 : f32
    %56 = vector.broadcast %cst_17 : f32 to vector<1x256xf32>
    %57 = arith.select %23, %55, %56 : vector<1x256xi1>, vector<1x256xf32>
    %c0_18 = arith.constant 0 : index
    %c0_19 = arith.constant 0 : index
    %c0_20 = arith.constant 0 : index
    %58 = vector.load %arg5[%c0_18, %c0_19, %c0_20] : memref<1x1x256xf32, #tpu.memory_space<vmem>>, vector<1x1x256xf32>
    %59 = vector.shape_cast %58 : vector<1x1x256xf32> to vector<1x256xf32>
    %60 = arith.addf %59, %57 : vector<1x256xf32>
    %c0_21 = arith.constant 0 : index
    %c0_22 = arith.constant 0 : index
    %c0_23 = arith.constant 0 : index
    %61 = vector.load %arg5[%c0_21, %c0_22, %c0_23] : memref<1x1x256xf32, #tpu.memory_space<vmem>>, vector<1x1x256xf32>
    %62 = vector.shape_cast %61 : vector<1x1x256xf32> to vector<1x256xf32>
    %63 = vector.shape_cast %60 : vector<1x256xf32> to vector<1x1x256xf32>
    tpu.vector_store %arg5[%c0_21, %c0_22, %c0_23], %63 {strides = array<i32>} : memref<1x1x256xf32, #tpu.memory_space<vmem>>, vector<1x1x256xf32>,
    %c0_24 = arith.constant 0 : index
    %c0_25 = arith.constant 0 : index
    %c0_26 = arith.constant 0 : index
    %64 = vector.load %arg6[%c0_24, %c0_25, %c0_26] : memref<1x1x256xf32, #tpu.memory_space<vmem>>, vector<1x1x256xf32>
    %65 = vector.shape_cast %64 : vector<1x1x256xf32> to vector<1x256xf32>
    %66 = arith.extui %23 : vector<1x256xi1> to vector<1x256xi32>
    %67 = arith.sitofp %66 : vector<1x256xi32> to vector<1x256xf32>
    %68 = arith.addf %65, %67 : vector<1x256xf32>
    %c0_27 = arith.constant 0 : index
    %c0_28 = arith.constant 0 : index
    %c0_29 = arith.constant 0 : index
    %69 = vector.load %arg6[%c0_27, %c0_28, %c0_29] : memref<1x1x256xf32, #tpu.memory_space<vmem>>, vector<1x1x256xf32>
    %70 = vector.shape_cast %69 : vector<1x1x256xf32> to vector<1x256xf32>
    %71 = vector.shape_cast %68 : vector<1x256xf32> to vector<1x1x256xf32>
    tpu.vector_store %arg6[%c0_27, %c0_28, %c0_29], %71 {strides = array<i32>} : memref<1x1x256xf32, #tpu.memory_space<vmem>>, vector<1x1x256xf32>,
    return
  }
  func.func @transform_0(%arg0: i32, %arg1: i32, %arg2: i32) -> (i32, i32, i32) {
    %c1_i32 = arith.constant 1 : i32
    %0 = arith.muli %arg1, %c1_i32 : i32
    %1 = arith.addi %0, %arg2 : i32
    %c0_i32 = arith.constant 0 : i32
    %2 = arith.minsi %1, %c0_i32 : i32
    %c0_i32_0 = arith.constant 0 : i32
    %c0_i32_1 = arith.constant 0 : i32
    return %arg0, %c0_i32_0, %2 : i32, i32, i32
  }
  func.func @transform_1(%arg0: i32, %arg1: i32, %arg2: i32) -> (i32, i32, i32) {
    %c1_i32 = arith.constant 1 : i32
    %0 = arith.muli %arg1, %c1_i32 : i32
    %1 = arith.addi %0, %arg2 : i32
    %c0_i32 = arith.constant 0 : i32
    %2 = arith.minsi %1, %c0_i32 : i32
    %c0_i32_0 = arith.constant 0 : i32
    %c0_i32_1 = arith.constant 0 : i32
    return %arg0, %c0_i32_0, %2 : i32, i32, i32
  }
  func.func @transform_2(%arg0: i32, %arg1: i32, %arg2: i32) -> (i32, i32, i32) {
    %c1_i32 = arith.constant 1 : i32
    %0 = arith.muli %arg0, %c1_i32 : i32
    %1 = arith.addi %0, %arg1 : i32
    %c0_i32 = arith.constant 0 : i32
    %c0_i32_0 = arith.constant 0 : i32
    %c0_i32_1 = arith.constant 0 : i32
    return %1, %c0_i32, %c0_i32_0 : i32, i32, i32
  }
  func.func @transform_3(%arg0: i32, %arg1: i32, %arg2: i32) -> (i32, i32, i32) {
    %c1_i32 = arith.constant 1 : i32
    %0 = arith.muli %arg0, %c1_i32 : i32
    %1 = arith.addi %0, %arg1 : i32
    %c0_i32 = arith.constant 0 : i32
    %c0_i32_0 = arith.constant 0 : i32
    %c0_i32_1 = arith.constant 0 : i32
    return %1, %c0_i32, %c0_i32_0 : i32, i32, i32
  }
}

</mosaic_0001>

<llo_original>
// kernel: focal_loss_2d.1
$region0: #{focal_loss_2d.1}
  #allocation0 [shape = 'u32[]', space=smem, size = 0x4, offset = 0x4, fixed_abs, tag = 'smem constant byte address 0x4 - core index']
  #allocation1 [shape = 'u32[144,128]{1,0:T(1,128)}', space=vmem, size = 0x12000, scoped, tag = 'internal scratch']
  %s0 = inlined_call_operand.vmem [shape: f32[2,19,256], index: 0, kind: input, shape index: {}]
  %s1 = inlined_call_operand.vmem [shape: s32[2,1,256], index: 1, kind: input, shape index: {}]
  %s2 = inlined_call_operand.vmem [shape: f32[2,1,256], index: 2, kind: output, shape index: {0}]
  %s3 = inlined_call_operand.vmem [shape: f32[2,1,256], index: 3, kind: output, shape index: {1}]
  %4 = xla_tuple %s2, %s3
  %s5 = sld [smem:[#allocation0]]
  $region53: #{focal_loss_2d.1} parent=0
    _
  %s7 = ssub.s32 1, %s5
  %s8 = scalar_select 0, %s7, %s5
  loop: start=0, step=1, limit=4
  $region2: #{focal_loss_2d.1} parent=0 // loop_pre_header
    _
  $region3: #{focal_loss_2d.1} parent=0 // loop_header
    %s10 = sphi 0, %s14
    %p11 = scmp.ge.s32.totalorder %s10, 4
    %s17 = sphi 0, %s36
    %s18 = sphi 0, %s32
    %s19 = sphi 0, %s28
    %s20 = sphi 0, %s17
    %s21 = sphi 0, %s18
    %s22 = sphi 0, %s19
    %s23 = sphi 0, %s20
    %s24 = sphi 0, %s21
    %s25 = sphi 0, %s22
    %s47 = sphi 0, %s49
    %s50 = sphi 0, %s47
    %s51 = sphi 0, %s50
    %s67 = sphi 0, %s51
    %s81 = sphi 0, %s83
    %s84 = sphi 0, %s81
    %s85 = sphi 0, %s84
    %s101 = sphi 0, %s85
    %s109 = sphi 0, %s111
    %s112 = sphi 0, %s109
    %s113 = sphi 0, %s112
    %s129 = sphi 0, %s113
    %s137 = sphi 0, %s139
    %s140 = sphi 0, %s137
    %s141 = sphi 0, %s140
    %s157 = sphi 0, %s141
  $region4: #{focal_loss_2d.1} parent=0 // loop_header_branch
    %13 = sbr.rel (%p11) target = $region8
  $region5: #{focal_loss_2d.1} parent=0 // loop_body
    %s15 = ssub.s32 %s10, 1
    %s16 = ssub.s32 %s10, 2
    %s26 = sadd.s32 1, %s19
    %p27 = scmp.ge.s32.totalorder %s26, 1
    %s28 = scalar_select %p27, 0, %s26
    %s29 = sadd.s32 1, %s18
    %s30 = scalar_select %p27, %s29, %s18
    %p31 = scmp.ge.s32.totalorder %s30, 1
    %s32 = scalar_select %p31, 0, %s30
    %s33 = sadd.s32 1, %s17
    %s34 = scalar_select %p31, %s33, %s17
    %p35 = scmp.ge.s32.totalorder %s34, 2
    %s36 = scalar_select %p35, 0, %s34
    %s37 = sadd.s32 %s18, %s19
    %p38 = scmp.lt.s32.totalorder %s37, 0
    %s39 = scalar_select %p38, %s37, 0
    %s40 = sadd.s32 %s32, %s28
    %p41 = scmp.lt.s32.totalorder %s40, 0
    %s42 = scalar_select %p41, %s40, 0
    %s43 = ssub.s32 %s17, %s36
    %s44 = ssub.s32 %s39, %s42
    %s45 = sor.u32 %s43, %s44
    %p46 = scmp.eq.s32.totalorder %s45, 0
    %s48 = sadd.s32 %s47, 1
    %s49 = scalar_select %p46, %s47, %s48
    %p52 = pneg %p46
    %p53 = scmp.eq.s32.totalorder %s10, 1
    %p54 = por %p52, %p53
    %p55 = scmp.ne.s32.totalorder %s47, %s50
    %p56 = scmp.eq.s32.totalorder %s10, 0
    %p57 = por %p55, %p56
    %p58 = scmp.ne.s32.totalorder %s47, %s50
    %p59 = scmp.eq.s32.totalorder %s15, 1
    %p60 = por %p58, %p59
    %p61 = scmp.ne.s32.totalorder %s50, %s51
    %p62 = scmp.eq.s32.totalorder %s15, 0
    %p63 = por %p61, %p62
    %p64 = scmp.ne.s32.totalorder %s50, %s51
    %p65 = scmp.eq.s32.totalorder %s16, 1
    %p66 = por %p64, %p65
    %p68 = scmp.ne.s32.totalorder %s51, %s67
    %p69 = scmp.eq.s32.totalorder %s16, 0
    %p70 = por %p68, %p69
    %s71 = sadd.s32 %s18, %s19
    %p72 = scmp.lt.s32.totalorder %s71, 0
    %s73 = scalar_select %p72, %s71, 0
    %s74 = sadd.s32 %s32, %s28
    %p75 = scmp.lt.s32.totalorder %s74, 0
    %s76 = scalar_select %p75, %s74, 0
    %s77 = ssub.s32 %s17, %s36
    %s78 = ssub.s32 %s73, %s76
    %s79 = sor.u32 %s77, %s78
    %p80 = scmp.eq.s32.totalorder %s79, 0
    %s82 = sadd.s32 %s81, 1
    %s83 = scalar_select %p80, %s81, %s82
    %p86 = pneg %p80
    %p87 = scmp.eq.s32.totalorder %s10, 1
    %p88 = por %p86, %p87
    %p89 = scmp.ne.s32.totalorder %s81, %s84
    %p90 = scmp.eq.s32.totalorder %s10, 0
    %p91 = por %p89, %p90
    %p92 = scmp.ne.s32.totalorder %s81, %s84
    %p93 = scmp.eq.s32.totalorder %s15, 1
    %p94 = por %p92, %p93
    %p95 = scmp.ne.s32.totalorder %s84, %s85
    %p96 = scmp.eq.s32.totalorder %s15, 0
    %p97 = por %p95, %p96
    %p98 = scmp.ne.s32.totalorder %s84, %s85
    %p99 = scmp.eq.s32.totalorder %s16, 1
    %p100 = por %p98, %p99
    %p102 = scmp.ne.s32.totalorder %s85, %s101
    %p103 = scmp.eq.s32.totalorder %s16, 0
    %p104 = por %p102, %p103
    %s105 = sadd.s32 %s17, %s18
    %s106 = sadd.s32 %s36, %s32
    %s107 = ssub.s32 %s105, %s106
    %p108 = scmp.eq.s32.totalorder %s107, 0
    %s110 = sadd.s32 %s109, 1
    %s111 = scalar_select %p108, %s109, %s110
    %p114 = pneg %p108
    %p115 = scmp.eq.s32.totalorder %s10, 1
    %p116 = por %p114, %p115
    %p117 = scmp.ne.s32.totalorder %s109, %s112
    %p118 = scmp.eq.s32.totalorder %s10, 0
    %p119 = por %p117, %p118
    %p120 = scmp.ne.s32.totalorder %s109, %s112
    %p121 = scmp.eq.s32.totalorder %s15, 1
    %p122 = por %p120, %p121
    %p123 = scmp.ne.s32.totalorder %s112, %s113
    %p124 = scmp.eq.s32.totalorder %s15, 0
    %p125 = por %p123, %p124
    %p126 = scmp.ne.s32.totalorder %s112, %s113
    %p127 = scmp.eq.s32.totalorder %s16, 1
    %p128 = por %p126, %p127
    %p130 = scmp.ne.s32.totalorder %s113, %s129
    %p131 = scmp.eq.s32.totalorder %s16, 0
    %p132 = por %p130, %p131
    %s133 = sadd.s32 %s17, %s18
    %s134 = sadd.s32 %s36, %s32
    %s135 = ssub.s32 %s133, %s134
    %p136 = scmp.eq.s32.totalorder %s135, 0
    %s138 = sadd.s32 %s137, 1
    %s139 = scalar_select %p136, %s137, %s138
    %p142 = pneg %p136
    %p143 = scmp.eq.s32.totalorder %s10, 1
    %p144 = por %p142, %p143
    %p145 = scmp.ne.s32.totalorder %s137, %s140
    %p146 = scmp.eq.s32.totalorder %s10, 0
    %p147 = por %p145, %p146
    %p148 = scmp.ne.s32.totalorder %s137, %s140
    %p149 = scmp.eq.s32.totalorder %s15, 1
    %p150 = por %p148, %p149
    %p151 = scmp.ne.s32.totalorder %s140, %s141
    %p152 = scmp.eq.s32.totalorder %s15, 0
    %p153 = por %p151, %p152
    %p154 = scmp.ne.s32.totalorder %s140, %s141
    %p155 = scmp.eq.s32.totalorder %s16, 1
    %p156 = por %p154, %p155
    %p158 = scmp.ne.s32.totalorder %s141, %s157
    %p159 = scmp.eq.s32.totalorder %s16, 0
    %p160 = por %p158, %p159
    %p161 = scmp.le.s32.totalorder 1, %s10
    %p162 = scmp.lt.s32.totalorder %s10, 3
    %p163 = pnand %p161, %p162
    %p164 = pneg %p163
    // Predicated region
    $region9: #{focal_loss_2d.1} parent=5 // pred_check
      _
    $region10: #{focal_loss_2d.1} parent=5 // pred_check_branch
      %166 = sbr.rel (%p163) target = $region12
    $region11: #{focal_loss_2d.1} parent=5 // pred_region
      %s167 = ssub.s32 %s10, 1
    $region12: #{focal_loss_2d.1} parent=5 // pred_fallthru
      _
    %p168 = scmp.lt.s32.totalorder %s10, 2
    // Predicated region
    $region13: #{focal_loss_2d.1} parent=5 // pred_check
      %p169 = pneg %p168
    $region14: #{focal_loss_2d.1} parent=5 // pred_check_branch
      %171 = sbr.rel (%p169) target = $region16
    $region15: #{focal_loss_2d.1} parent=5 // pred_region
      // Predicated region
      $region17: #{focal_loss_2d.1} parent=15 // pred_check
        %p172 = pneg %p57
      $region18: #{focal_loss_2d.1} parent=15 // pred_check_branch
        %174 = sbr.rel (%p172) target = $region20
      $region19: #{focal_loss_2d.1} parent=15 // pred_region
        %s175 = sadd.s32 %s18, %s19
        %p176 = scmp.lt.s32.totalorder %s175, 0
        %s177 = scalar_select %p176, %s175, 0
        %s178 = smul.u32 2, %s177
        %p179 = scmp.lt.s32.totalorder %s17, 1
        %s180 = scalar_select %p179, %s17, 1
        %p181 = scmp.lt.s32.totalorder %s178, 1
        %s182 = scalar_select %p181, %s178, 1
        %s183 = smul.addr %s180, 6
        %s184 = sadd.s32 %s182, %s183
        %s185 = smul.addr %s184, 8
        %s186 = scalar_lea.vmem %s0, %s185
        %s187 = sadd.s32 %s18, %s19
        %p188 = scmp.lt.s32.totalorder %s187, 0
        %s189 = scalar_select %p188, %s187, 0
        %s190 = smul.u32 2, %s189
      $region20: #{focal_loss_2d.1} parent=15 // pred_fallthru
        _
      // Predicated region
      $region21: #{focal_loss_2d.1} parent=15 // pred_check
        %p191 = pneg %p91
      $region22: #{focal_loss_2d.1} parent=15 // pred_check_branch
        %193 = sbr.rel (%p191) target = $region24
      $region23: #{focal_loss_2d.1} parent=15 // pred_region
        %s194 = sadd.s32 %s18, %s19
        %p195 = scmp.lt.s32.totalorder %s194, 0
        %s196 = scalar_select %p195, %s194, 0
        %s197 = smul.u32 2, %s196
        %p198 = scmp.lt.s32.totalorder %s17, 1
        %s199 = scalar_select %p198, %s17, 1
        %p200 = scmp.lt.s32.totalorder %s197, 1
        %s201 = scalar_select %p200, %s197, 1
        %s202 = smul.addr %s199, 2
        %s203 = sadd.s32 %s201, %s202
        %s204 = scalar_lea.vmem %s1, %s203
        %s205 = sadd.s32 %s18, %s19
        %p206 = scmp.lt.s32.totalorder %s205, 0
        %s207 = scalar_select %p206, %s205, 0
        %s208 = smul.u32 2, %s207
      $region24: #{focal_loss_2d.1} parent=15 // pred_fallthru
        _
    $region16: #{focal_loss_2d.1} parent=5 // pred_fallthru
      _
    %p209 = scmp.le.s32.totalorder 1, %s10
    %p210 = scmp.lt.s32.totalorder %s10, 3
    %p211 = pnand %p209, %p210
    %p212 = pneg %p211
    // Predicated region
    $region25: #{focal_loss_2d.1} parent=5 // pred_check
      _
    $region26: #{focal_loss_2d.1} parent=5 // pred_check_branch
      %214 = sbr.rel (%p211) target = $region28
    $region27: #{focal_loss_2d.1} parent=5 // pred_region
      %s215 = ssub.s32 %s10, 1
      %s216 = sadd.s32 %s21, %s22
      %p217 = scmp.lt.s32.totalorder %s216, 0
      %s218 = scalar_select %p217, %s216, 0
      %s219 = smul.u32 2, %s218
      %p220 = scmp.lt.s32.totalorder %s20, 1
      %s221 = scalar_select %p220, %s20, 1
      %p222 = scmp.lt.s32.totalorder %s219, 1
      %s223 = scalar_select %p222, %s219, 1
      %s224 = smul.addr %s221, 6
      %s225 = sadd.s32 %s223, %s224
      %s226 = smul.addr %s225, 8
      %s227 = scalar_lea.vmem %s0, %s226
      %p228 = pneg %p63
      %p229 = pneg %p60
      %s230 = sadd.s32 %s21, %s22
      %p231 = scmp.lt.s32.totalorder %s230, 0
      %s232 = scalar_select %p231, %s230, 0
      %s233 = smul.u32 2, %s232
      %p234 = scmp.lt.s32.totalorder %s20, 1
      %s235 = scalar_select %p234, %s20, 1
      %p236 = scmp.lt.s32.totalorder %s233, 1
      %s237 = scalar_select %p236, %s233, 1
      %s238 = smul.addr %s235, 2
      %s239 = sadd.s32 %s237, %s238
      %s240 = scalar_lea.vmem %s1, %s239
      %p241 = pneg %p97
      %p242 = pneg %p94
      %p243 = pneg %p125
      %p244 = pneg %p122
      %s245 = sadd.s32 %s20, %s21
      %p246 = scmp.lt.s32.totalorder %s245, 1
      %s247 = scalar_select %p246, %s245, 1
      %s248 = smul.addr %s247, 2
      %s249 = scalar_lea.vmem %s2, %s248
      %p250 = pneg %p153
      %p251 = pneg %p150
      %s252 = sadd.s32 %s20, %s21
      %p253 = scmp.lt.s32.totalorder %s252, 1
      %s254 = scalar_select %p253, %s252, 1
      %s255 = smul.addr %s254, 2
      %s256 = scalar_lea.vmem %s3, %s255
      %s257 = sadd.s32 %s21, %s22
      %p258 = scmp.lt.s32.totalorder %s257, 0
      %s259 = scalar_select %p258, %s257, 0
      %s260 = smul.u32 2, %s259
      %p261 = scmp.lt.s32.totalorder %s20, 1
      %s262 = scalar_select %p261, %s20, 1
      %p263 = scmp.lt.s32.totalorder %s260, 1
      %s264 = scalar_select %p263, %s260, 1
      %s265 = smul.addr %s262, 6
      %s266 = sadd.s32 %s264, %s265
      %s267 = smul.addr %s266, 8
      %s268 = scalar_lea.vmem %s0, %s267
      %s269 = sadd.s32 %s21, %s22
      %p270 = scmp.lt.s32.totalorder %s269, 0
      %s271 = scalar_select %p270, %s269, 0
      %s272 = smul.u32 2, %s271
      %s273 = sadd.s32 %s21, %s22
      %p274 = scmp.lt.s32.totalorder %s273, 0
      %s275 = scalar_select %p274, %s273, 0
      %s276 = smul.u32 2, %s275
      %p277 = scmp.lt.s32.totalorder %s20, 1
      %s278 = scalar_select %p277, %s20, 1
      %p279 = scmp.lt.s32.totalorder %s276, 1
      %s280 = scalar_select %p279, %s276, 1
      %s281 = smul.addr %s278, 2
      %s282 = sadd.s32 %s280, %s281
      %s283 = scalar_lea.vmem %s1, %s282
      %s284 = sadd.s32 %s21, %s22
      %p285 = scmp.lt.s32.totalorder %s284, 0
      %s286 = scalar_select %p285, %s284, 0
      %s287 = smul.u32 2, %s286
      %s288 = sadd.s32 %s20, %s21
      %p289 = scmp.lt.s32.totalorder %s288, 1
      %s290 = scalar_select %p289, %s288, 1
      %s291 = smul.addr %s290, 2
      %s292 = scalar_lea.vmem %s2, %s291
      %s293 = sadd.s32 %s20, %s21
      %s294 = sadd.s32 %s20, %s21
      %p295 = scmp.lt.s32.totalorder %s294, 1
      %s296 = scalar_select %p295, %s294, 1
      %s297 = smul.addr %s296, 2
      %s298 = scalar_lea.vmem %s3, %s297
      %s299 = sadd.s32 %s20, %s21
      %p300 = scmp.eq.s32.totalorder %s22, 0
      // Predicated region
      $region29: #{focal_loss_2d.1} parent=27 // pred_check
        %p301 = pneg %p300
      $region30: #{focal_loss_2d.1} parent=27 // pred_check_branch
        %303 = sbr.rel (%p301) target = $region32
      $region31: #{focal_loss_2d.1} parent=27 // pred_region
        %v304 = vlaneseq
        %vm305 = vcmp.ge.s32.totalorder %v304, 0
        %vm306 = vcmp.lt.s32.totalorder %v304, 256
        %vm307 = vmand %vm305, %vm306
        %308 = vst.msk [vmem:[%s292] sm:$0x3] %vm307, 0.0
        %309 = vst.msk [vmem:[%s298] sm:$0x3] %vm307, 0.0
      $region32: #{focal_loss_2d.1} parent=27 // pred_fallthru
        _
      %v310 = vld [vmem:[%s268] sm:$0xff]
      %v311 = vld [vmem:[%s268 + $0x8] sm:$0xff]
      %v312 = vld [vmem:[%s268 + $0x10] sm:$0xff]
      %v313 = vld [vmem:[%s268 + $0x18] sm:$0xff]
      %v314 = vld [vmem:[%s268 + $0x20] sm:$0x7]
      %v315 = vld [vmem:[%s268 + $0x28] sm:$0x7]
      %v316 = vld [vmem:[%s283] sm:$0x3]
      %s317 = sadd.s32 %s21, %s22
      %v318 = vlaneseq
      %v319 = vand.u32 %v318, 127
      %v320 = vadd.s32 %v319, 128
      %s321 = smul.u32 %s317, 256
      %v322 = vstv %s321
      %v323 = vadd.s32 %v322, %v319
      %v324 = vadd.s32 %v322, %v320
      %vm325 = vcmp.lt.s32.totalorder %v323, 256
      %vm326 = vcmp.lt.s32.totalorder %v324, 256
      %vm327 = vcmp.ge.s32.totalorder %v316, 0
      %vm328 = vcmp.ne.s32.totalorder %v316, 250
      %vm329 = vmand %vm327, %vm328
      %vm330 = vcmp.lt.s32.totalorder %v316, 19
      %vm331 = vmand %vm329, %vm330
      %v332 = vsel %vm325, 1, 0
      %v333 = vsel %vm326, 1, 0
      %v334 = vcombine.low %v332, %v333
      %v336 = vunpack.c.l.s4 1966171168
      %v337 = vunpack.c.0.s8 %v336
      %v338 = vlaneseq
      %v339 = vshrl.u32 %v338, 7
      %v340 = vsub.s32 %v337, %v339
      %v341 = vrot.slane %v334, %v340
      %v343 = vunpack.c.l.s4 1966171168
      %v344 = vunpack.c.0.s8 %v343
      %v345 = vlaneseq
      %v346 = vshrl.u32 %v345, 7
      %v347 = vsub.s32 %v344, %v346
      %v348 = vrot.slane %v341, %v347
      %vm349 = vcmp.ne.s32.totalorder %v348, 0
      %vm350 = vmand %vm331, %vm349
      %vm351 = vcmask 1042432
      %v352 = vsel %vm351, %v314, -inf
      %v353 = vmax.f32 %v310, %v352
      %v354 = vmax.f32 %v353, %v312
      %v355 = vrot.slane %v354, 4
      %v356 = vmax.f32 %v354, %v355
      %v357 = vrot.slane %v356, 2
      %v358 = vmax.f32 %v356, %v357
      %v359 = vrot.slane %v358, 1
      %v360 = vmax.f32 %v358, %v359
      %v361 = vsel %vm351, %v315, -inf
      %v362 = vmax.f32 %v311, %v361
      %v363 = vmax.f32 %v362, %v313
      %v364 = vrot.slane %v363, 4
      %v365 = vmax.f32 %v363, %v364
      %v366 = vrot.slane %v365, 2
      %v367 = vmax.f32 %v365, %v366
      %v368 = vrot.slane %v367, 1
      %v369 = vmax.f32 %v367, %v368
      %v370 = vsub.f32 %v310, %v360
      %v371 = vsub.f32 %v311, %v369
      %v372 = vsub.f32 %v312, %v360
      %v373 = vsub.f32 %v313, %v369
      %v374 = vsub.f32 %v314, %v360
      %v375 = vsub.f32 %v315, %v369
      %v376 = vmul.f32 %v370, 1.442695
      %v377 = vpow.pop %v376
      %v378 = vmul.f32 %v371, 1.442695
      %v379 = vpow.pop %v378
      %v380 = vmul.f32 %v372, 1.442695
      %v381 = vpow.pop %v380
      %v382 = vmul.f32 %v373, 1.442695
      %v383 = vpow.pop %v382
      %v384 = vmul.f32 %v374, 1.442695
      %v385 = vpow.pop %v384
      %v386 = vmul.f32 %v375, 1.442695
      %v387 = vpow.pop %v386
      %v388 = vadd.f32 %v377, %v381
      %v389 = vsel %vm351, %v385, 0.0
      %v390 = vadd.f32 %v388, %v389
      %v391 = vrot.slane %v390, 4
      %v392 = vadd.f32 %v390, %v391
      %v393 = vrot.slane %v392, 2
      %v394 = vadd.f32 %v392, %v393
      %v395 = vrot.slane %v394, 1
      %v396 = vadd.f32 %v394, %v395
      %v397 = vadd.f32 %v379, %v383
      %v398 = vsel %vm351, %v387, 0.0
      %v399 = vadd.f32 %v397, %v398
      %v400 = vrot.slane %v399, 4
      %v401 = vadd.f32 %v399, %v400
      %v402 = vrot.slane %v401, 2
      %v403 = vadd.f32 %v401, %v402
      %v404 = vrot.slane %v403, 1
      %v405 = vadd.f32 %v403, %v404
      %v406 = vlaneseq
      %v407 = vshrl.u32 %v406, 7
      %v408 = vadd.s32 %v407, 8
      %v409 = vadd.s32 %v407, 16
      %v410 = vlaneseq
      %v411 = vshrl.u32 %v410, 7
      %v412 = vsub.s32 0, %v411
      %v413 = vrot.slane %v316, %v412
      %v414 = vlaneseq
      %v415 = vshrl.u32 %v414, 7
      %v416 = vsub.s32 1, %v415
      %v417 = vrot.slane %v316, %v416
      %vm418 = vcmp.eq.s32.totalorder %v407, %v413
      %vm419 = vcmp.eq.s32.totalorder %v407, %v417
      %vm420 = vcmp.eq.s32.totalorder %v408, %v413
      %vm421 = vcmp.eq.s32.totalorder %v408, %v417
      %vm422 = vcmp.eq.s32.totalorder %v409, %v413
      %vm423 = vcmp.eq.s32.totalorder %v409, %v417
      %v424 = vsel %vm418, %v310, 0.0
      %v425 = vsel %vm419, %v311, 0.0
      %v426 = vsel %vm420, %v312, 0.0
      %v427 = vsel %vm421, %v313, 0.0
      %v428 = vsel %vm422, %v314, 0.0
      %v429 = vsel %vm423, %v315, 0.0
      %v430 = vadd.f32 %v424, %v426
      %v431 = vsel %vm351, %v428, 0.0
      %v432 = vadd.f32 %v430, %v431
      %v433 = vrot.slane %v432, 4
      %v434 = vadd.f32 %v432, %v433
      %v435 = vrot.slane %v434, 2
      %v436 = vadd.f32 %v434, %v435
      %v437 = vrot.slane %v436, 1
      %v438 = vadd.f32 %v436, %v437
      %v439 = vadd.f32 %v425, %v427
      %v440 = vsel %vm351, %v429, 0.0
      %v441 = vadd.f32 %v439, %v440
      %v442 = vrot.slane %v441, 4
      %v443 = vadd.f32 %v441, %v442
      %v444 = vrot.slane %v443, 2
      %v445 = vadd.f32 %v443, %v444
      %v446 = vrot.slane %v445, 1
      %v447 = vadd.f32 %v445, %v446
      %v448 = vsel %vm418, %v377, 0.0
      %v449 = vsel %vm419, %v379, 0.0
      %v450 = vsel %vm420, %v381, 0.0
      %v451 = vsel %vm421, %v383, 0.0
      %v452 = vsel %vm422, %v385, 0.0
      %v453 = vsel %vm423, %v387, 0.0
      %v454 = vadd.f32 %v448, %v450
      %v455 = vsel %vm351, %v452, 0.0
      %v456 = vadd.f32 %v454, %v455
      %v457 = vrot.slane %v456, 4
      %v458 = vadd.f32 %v456, %v457
      %v459 = vrot.slane %v458, 2
      %v460 = vadd.f32 %v458, %v459
      %v461 = vrot.slane %v460, 1
      %v462 = vadd.f32 %v460, %v461
      %v463 = vadd.f32 %v449, %v451
      %v464 = vsel %vm351, %v453, 0.0
      %v465 = vadd.f32 %v463, %v464
      %v466 = vrot.slane %v465, 4
      %v467 = vadd.f32 %v465, %v466
      %v468 = vrot.slane %v467, 2
      %v469 = vadd.f32 %v467, %v468
      %v470 = vrot.slane %v469, 1
      %v471 = vadd.f32 %v469, %v470
      %v472 = vrcp.pop %v396
      %v473 = vmul.f32 %v462, %v472
      %v474 = vrcp.pop %v405
      %v475 = vmul.f32 %v471, %v474
      %v476 = vmax.f32 %v473, 1e-08
      %v477 = vmax.f32 %v475, 1e-08
      %v478 = vsub.f32 %v438, %v360
      %v479 = vsub.f32 %v447, %v369
      %v480 = vlog2.pop %v396
      %v481 = vmul.f32 %v480, 0.6931472
      %v482 = vlog2.pop %v405
      %v483 = vmul.f32 %v482, 0.6931472
      %v484 = vsub.f32 %v478, %v481
      %v485 = vsub.f32 %v479, %v483
      %v486 = vmax.f32 %v484, -18.420681
      %v487 = vmax.f32 %v485, -18.420681
      %v488 = vsub.f32 1.0, %v476
      %v489 = vsub.f32 1.0, %v477
      %v490 = vmul.f32 %v488, %v488
      %v491 = vmul.f32 %v489, %v489
      %v492 = vmul.f32 %v490, -0.25
      %v493 = vmul.f32 %v491, -0.25
      %v494 = vmul.f32 %v492, %v486
      %v495 = vmul.f32 %v493, %v487
      %v498 = vcombine.low %v494, %v495
      %v500 = vunpack.c.l.s4 1966171168
      %v501 = vunpack.c.0.s8 %v500
      %v502 = vlaneseq
      %v503 = vshrl.u32 %v502, 7
      %v504 = vsub.s32 %v501, %v503
      %v505 = vrot.slane %v498, %v504
      %v507 = vunpack.c.l.s4 1966171168
      %v508 = vunpack.c.0.s8 %v507
      %v509 = vlaneseq
      %v510 = vshrl.u32 %v509, 7
      %v511 = vsub.s32 %v508, %v510
      %v512 = vrot.slane %v505, %v511
      %v514 = vsel %vm350, %v512, 0.0
      %v515 = vld [vmem:[%s292] sm:$0x3]
      %v516 = vadd.f32 %v515, %v514
      %v517 = vlaneseq
      %vm518 = vcmp.ge.s32.totalorder %v517, 0
      %vm519 = vcmp.lt.s32.totalorder %v517, 256
      %vm520 = vmand %vm518, %vm519
      %521 = vst.msk [vmem:[%s292] sm:$0x3] %vm520, %v516
      %v522 = vld [vmem:[%s298] sm:$0x3]
      %v523 = vsel %vm350, 1, 0
      %v524 = vcvt.s32.f32 %v523
      %v525 = vadd.f32 %v522, %v524
      %526 = vst.msk [vmem:[%s298] sm:$0x3] %vm520, %v525
      %s527 = sadd.s32 %s20, %s21
      %p528 = scmp.lt.s32.totalorder %s527, 1
      %s529 = scalar_select %p528, %s527, 1
      %s530 = smul.addr %s529, 2
      %s531 = scalar_lea.vmem %s2, %s530
      %s532 = sadd.s32 %s20, %s21
      %p533 = scmp.lt.s32.totalorder %s532, 1
      %s534 = scalar_select %p533, %s532, 1
      %s535 = smul.addr %s534, 2
      %s536 = scalar_lea.vmem %s3, %s535
      // Predicated region
      $region33: #{focal_loss_2d.1} parent=27 // pred_check
        %p537 = pneg %p122
      $region34: #{focal_loss_2d.1} parent=27 // pred_check_branch
        %539 = sbr.rel (%p537) target = $region36
      $region35: #{focal_loss_2d.1} parent=27 // pred_region
        %s540 = sadd.s32 %s20, %s21
      $region36: #{focal_loss_2d.1} parent=27 // pred_fallthru
        _
      // Predicated region
      $region37: #{focal_loss_2d.1} parent=27 // pred_check
        %p541 = pneg %p150
      $region38: #{focal_loss_2d.1} parent=27 // pred_check_branch
        %543 = sbr.rel (%p541) target = $region40
      $region39: #{focal_loss_2d.1} parent=27 // pred_region
        %s544 = sadd.s32 %s20, %s21
      $region40: #{focal_loss_2d.1} parent=27 // pred_fallthru
        _
    $region28: #{focal_loss_2d.1} parent=5 // pred_fallthru
      _
    %p545 = scmp.le.s32.totalorder 2, %s10
    // Predicated region
    $region41: #{focal_loss_2d.1} parent=5 // pred_check
      %p546 = pneg %p545
    $region42: #{focal_loss_2d.1} parent=5 // pred_check_branch
      %548 = sbr.rel (%p546) target = $region44
    $region43: #{focal_loss_2d.1} parent=5 // pred_region
      %s549 = ssub.s32 %s10, 2
      // Predicated region
      $region45: #{focal_loss_2d.1} parent=43 // pred_check
        %p550 = pneg %p128
      $region46: #{focal_loss_2d.1} parent=43 // pred_check_branch
        %552 = sbr.rel (%p550) target = $region48
      $region47: #{focal_loss_2d.1} parent=43 // pred_region
        %s553 = sadd.s32 %s23, %s24
        %p554 = scmp.lt.s32.totalorder %s553, 1
        %s555 = scalar_select %p554, %s553, 1
        %s556 = smul.addr %s555, 2
        %s557 = scalar_lea.vmem %s2, %s556
      $region48: #{focal_loss_2d.1} parent=43 // pred_fallthru
        _
      // Predicated region
      $region49: #{focal_loss_2d.1} parent=43 // pred_check
        %p558 = pneg %p156
      $region50: #{focal_loss_2d.1} parent=43 // pred_check_branch
        %560 = sbr.rel (%p558) target = $region52
      $region51: #{focal_loss_2d.1} parent=43 // pred_region
        %s561 = sadd.s32 %s23, %s24
        %p562 = scmp.lt.s32.totalorder %s561, 1
        %s563 = scalar_select %p562, %s561, 1
        %s564 = smul.addr %s563, 2
        %s565 = scalar_lea.vmem %s3, %s564
      $region52: #{focal_loss_2d.1} parent=43 // pred_fallthru
        _
    $region44: #{focal_loss_2d.1} parent=5 // pred_fallthru
      _
  $region6: #{focal_loss_2d.1} parent=0 // loop_footer
    %s14 = sadd.s32 1, %s10
  $region7: #{focal_loss_2d.1} parent=0 // loop_footer_branch
    %9 = sbr.rel target = $region3
  $region8: #{focal_loss_2d.1} parent=0 // loop_exit
    _

</llo_original>
